<compile_context>
chip_gen: v7x
topology: tpu7x:2x2x1
jax: 0.10.0
libtpu: 0.0.40
codegen_flags: <defaults>
</compile_context>

<pallas_src>
import functools

import jax
import jax.numpy as jnp
from jax.experimental import pallas as pl
from jax.experimental.pallas import tpu as pltpu

_TILE_BYTE_BUDGET = 2 * 1024 * 1024  # per-block cap; 2x-buffered in+out fits VMEM


# ---------------------------------------------------------------------------
# forward(x) = x
# ---------------------------------------------------------------------------
def pallas_forward(x):
    """AudioRetrievalModel.forward: identity.

    No pallas_call is issued: a copy kernel would add 2x the tensor size in
    HBM DMA traffic plus launch overhead for zero semantic work.
    """
    return x


# ---------------------------------------------------------------------------
# shared tiling helper
# ---------------------------------------------------------------------------
def _choose_row_tile(rows, row_bytes, budget=_TILE_BYTE_BUDGET):
    """Tile size over a leading row axis.

    Either the full `rows` (block dim equals the full array dim, always legal)
    or the largest multiple-of-8 divisor of `rows` whose tile stays under
    `budget` bytes, so a double-buffered in+out pipeline fits comfortably in
    scoped VMEM on v5e/v6e/v7x.
    """
    if rows * row_bytes <= budget:
        return rows
    best = 0
    for d in range(8, rows, 8):
        if rows % d == 0 and d * row_bytes <= budget:
            best = d
    return best if best > 0 else rows


# ---------------------------------------------------------------------------
# forward_video hot elementwise path:
#   frame_hidden_state = frame_position_embeddings.unsqueeze(-2) + q_hidden
#   (b, t, 1, h) + (b, t, q, h) -> (b, t, q, h)
# ---------------------------------------------------------------------------
def _pos_add_4d_kernel(pos_ref, hid_ref, out_ref):
    # pos_ref: (1, T, h)   hid_ref/out_ref: (1, T, q, h)
    # h on lanes, q on sublanes; the broadcast over q is a cheap sublane
    # broadcast, hoisted so it happens once per tile.
    pos = pos_ref[...]
    out_ref[...] = hid_ref[...] + pos[:, :, None, :]


def _pos_add_folded_kernel(q, pos_ref, hid_ref, out_ref):
    # pos_ref: (1, T, h)   hid_ref/out_ref: (1, T, q*h)  -- lane-dense output.
    # Replicate pos q times along lanes once per tile (jnp.tile is the
    # supported replacement for the deprecated pltpu.repeat).
    pos_tiled = jnp.tile(pos_ref[...], (1, 1, q))
    out_ref[...] = hid_ref[...] + pos_tiled


def pallas_frame_pos_add(pos_emb, q_hidden):
    """pos_emb: (b, t, h), q_hidden: (b, t, q, h) -> (b, t, q, h)."""
    b, t, h = pos_emb.shape
    _, _, q, _ = q_hidden.shape
    assert q_hidden.shape == (b, t, q, h)
    assert pos_emb.dtype == q_hidden.dtype

    itemsize = jnp.dtype(q_hidden.dtype).itemsize
    t_tile = _choose_row_tile(t, q * h * itemsize)
    grid = (b, t // t_tile)
    cparams = pltpu.CompilerParams(
        dimension_semantics=("parallel", "parallel"))

    # Lane-density: if h is not a multiple of 128 but q*h is, fold (q, h) onto
    # the lane axis so stores are unmasked. Otherwise keep the natural 4-D
    # layout (real Q-Former h=768 is already a multiple of 128).
    fold = (h % 128 != 0) and ((q * h) % 128 == 0)

    if fold:
        hid2 = q_hidden.reshape(b, t, q * h)          # metadata-only reshape
        out = pl.pallas_call(
            functools.partial(_pos_add_folded_kernel, q),
            out_shape=jax.ShapeDtypeStruct((b, t, q * h), q_hidden.dtype),
            grid_spec=pltpu.PrefetchScalarGridSpec(
                num_scalar_prefetch=0,
                grid=grid,
                in_specs=[
                    pl.BlockSpec((1, t_tile, h),
                                 lambda bi, ti: (bi, ti, 0)),
                    pl.BlockSpec((1, t_tile, q * h),
                                 lambda bi, ti: (bi, ti, 0)),
                ],
                out_specs=pl.BlockSpec((1, t_tile, q * h),
                                       lambda bi, ti: (bi, ti, 0)),
            ),
            compiler_params=cparams,
        )(pos_emb, hid2)
        return out.reshape(b, t, q, h)

    return pl.pallas_call(
        _pos_add_4d_kernel,
        out_shape=jax.ShapeDtypeStruct((b, t, q, h), q_hidden.dtype),
        grid_spec=pltpu.PrefetchScalarGridSpec(
            num_scalar_prefetch=0,
            grid=grid,
            in_specs=[
                pl.BlockSpec((1, t_tile, h),
                             lambda bi, ti: (bi, ti, 0)),
                pl.BlockSpec((1, t_tile, q, h),
                             lambda bi, ti: (bi, ti, 0, 0)),
            ],
            out_specs=pl.BlockSpec((1, t_tile, q, h),
                                   lambda bi, ti: (bi, ti, 0, 0)),
        ),
        compiler_params=cparams,
    )(pos_emb, q_hidden)


# ---------------------------------------------------------------------------
# forward_audio hot elementwise path:
#   audio_imagebind_finalout = audio_imagebind_finalout
#                              + audio_position_embeddings   # same shapes
# ---------------------------------------------------------------------------
def _add_kernel(a_ref, b_ref, o_ref):
    o_ref[...] = a_ref[...] + b_ref[...]


def pallas_audio_pos_add(audio_feat, pos_emb):
    """Elementwise add of two same-shape arrays, e.g. (b, t, h) + (b, t, h)."""
    assert audio_feat.shape == pos_emb.shape
    assert audio_feat.dtype == pos_emb.dtype
    orig_shape = audio_feat.shape
    n = audio_feat.size
    itemsize = jnp.dtype(audio_feat.dtype).itemsize

    # Flatten into the widest lane-dense 2-D layout (lanes a multiple of 128
    # dividing n) so stores are unmasked vst; fall back to a single row.
    lanes = 0
    for c in (4096, 2048, 1024, 512, 256, 128):
        if n % c == 0:
            lanes = c
            break
    if lanes == 0:
        a2 = audio_feat.reshape(1, n)
        b2 = pos_emb.reshape(1, n)
    else:
        a2 = audio_feat.reshape(n // lanes, lanes)
        b2 = pos_emb.reshape(n // lanes, lanes)

    rows, cols = a2.shape
    r_tile = _choose_row_tile(rows, cols * itemsize)
    grid = (rows // r_tile,)

    out = pl.pallas_call(
        _add_kernel,
        out_shape=jax.ShapeDtypeStruct((rows, cols), audio_feat.dtype),
        grid_spec=pltpu.PrefetchScalarGridSpec(
            num_scalar_prefetch=0,
            grid=grid,
            in_specs=[
                pl.BlockSpec((r_tile, cols), lambda i: (i, 0)),
                pl.BlockSpec((r_tile, cols), lambda i: (i, 0)),
            ],
            out_specs=pl.BlockSpec((r_tile, cols), lambda i: (i, 0)),
        ),
        compiler_params=pltpu.CompilerParams(
            dimension_semantics=("parallel",)),
    )(a2, b2)
    return out.reshape(orig_shape)


if __name__ == "__main__":
    key = jax.random.PRNGKey(0)
    k1, k2, k3, k4, k5, k6 = jax.random.split(key, 6)

    # --- forward(x) = x -----------------------------------------------------
    x = jax.random.normal(k1, (2, 4, 16, 16), dtype=jnp.float32)  # NCHW-ish
    y = jax.block_until_ready(pallas_forward(x))
    assert y.shape == x.shape and y.dtype == x.dtype
    assert jnp.array_equal(y, x), "identity forward mismatch"

    # --- forward_video positional add (synthetic, deterministic) ------------
    # Folded lane-dense path: h=32 < 128, q*h=256 is a multiple of 128.
    b, t, q, h = 2, 4, 8, 32
    pos_emb = jax.random.normal(k2, (b, t, h), dtype=jnp.float32)
    q_hidden = jax.random.normal(k3, (b, t, q, h), dtype=jnp.float32)
    out = jax.block_until_ready(pallas_frame_pos_add(pos_emb, q_hidden))
    ref = q_hidden + pos_emb[:, :, None, :]
    assert jnp.allclose(out, ref, atol=1e-6), "pos-add (folded) mismatch"

    # Natural 4-D path: h multiple of 128 (lane-dense without folding),
    # mirrors the real Q-Former case (h=768).
    h2 = 128
    pos_emb2 = jax.random.normal(k4, (b, t, h2), dtype=jnp.float32)
    q_hidden2 = jax.random.normal(k5, (b, t, q, h2), dtype=jnp.float32)
    out2 = jax.block_until_ready(pallas_frame_pos_add(pos_emb2, q_hidden2))
    ref2 = q_hidden2 + pos_emb2[:, :, None, :]
    assert jnp.allclose(out2, ref2, atol=1e-6), "pos-add (4-D) mismatch"

    # --- forward_audio positional add ---------------------------------------
    ba, ta, ha = 2, 8, 32
    audio_feat = jax.random.normal(k6, (ba, ta, ha), dtype=jnp.float32)
    audio_pos = jax.random.normal(k1, (ba, ta, ha), dtype=jnp.float32)
    out3 = jax.block_until_ready(pallas_audio_pos_add(audio_feat, audio_pos))
    ref3 = audio_feat + audio_pos
    assert jnp.allclose(out3, ref3, atol=1e-6), "audio pos-add mismatch"

    print("KERNEL_OK")
</pallas_src>

<mosaic_0001>
module attributes {stable_mosaic.version = 11 : i64} {
  func.func @_pos_add_folded_kernel(%arg0: i32, %arg1: i32, %arg2: memref<1x4x32xf32, #tpu.memory_space<vmem>>, %arg3: memref<1x4x256xf32, #tpu.memory_space<vmem>>, %arg4: memref<1x4x256xf32, #tpu.memory_space<vmem>>) attributes {dimension_semantics = [#tpu.dimension_semantics<parallel>, #tpu.dimension_semantics<parallel>], iteration_bounds = array<i64: 2, 1>, scalar_prefetch = 0 : i64, scratch_operands = 0 : i64, tpu.core_type = #tpu.core_type<tc>, window_params = [{transform_indices = @transform_0, window_bounds = array<i64: 1, 4, 32>}, {transform_indices = @transform_1, window_bounds = array<i64: 1, 4, 256>}, {transform_indices = @transform_2, window_bounds = array<i64: 1, 4, 256>}]} {
    %c0 = arith.constant 0 : index
    %c0_0 = arith.constant 0 : index
    %c0_1 = arith.constant 0 : index
    %0 = vector.load %arg2[%c0, %c0_0, %c0_1] : memref<1x4x32xf32, #tpu.memory_space<vmem>>, vector<1x4x32xf32>
    %1 = tpu.concatenate %0, %0, %0, %0, %0, %0, %0, %0 in 2 : vector<1x4x32xf32>, vector<1x4x32xf32>, vector<1x4x32xf32>, vector<1x4x32xf32>, vector<1x4x32xf32>, vector<1x4x32xf32>, vector<1x4x32xf32>, vector<1x4x32xf32> -> vector<1x4x256xf32>
    %c0_2 = arith.constant 0 : index
    %c0_3 = arith.constant 0 : index
    %c0_4 = arith.constant 0 : index
    %2 = vector.load %arg3[%c0_2, %c0_3, %c0_4] : memref<1x4x256xf32, #tpu.memory_space<vmem>>, vector<1x4x256xf32>
    %3 = arith.addf %2, %1 : vector<1x4x256xf32>
    %c0_5 = arith.constant 0 : index
    %c0_6 = arith.constant 0 : index
    %c0_7 = arith.constant 0 : index
    %4 = vector.load %arg4[%c0_5, %c0_6, %c0_7] : memref<1x4x256xf32, #tpu.memory_space<vmem>>, vector<1x4x256xf32>
    tpu.vector_store %arg4[%c0_5, %c0_6, %c0_7], %3 {strides = array<i32>} : memref<1x4x256xf32, #tpu.memory_space<vmem>>, vector<1x4x256xf32>,
    return
  }
  func.func @transform_0(%arg0: i32, %arg1: i32) -> (i32, i32, i32) {
    %c0_i32 = arith.constant 0 : i32
    %c0_i32_0 = arith.constant 0 : i32
    return %arg0, %arg1, %c0_i32 : i32, i32, i32
  }
  func.func @transform_1(%arg0: i32, %arg1: i32) -> (i32, i32, i32) {
    %c0_i32 = arith.constant 0 : i32
    %c0_i32_0 = arith.constant 0 : i32
    return %arg0, %arg1, %c0_i32 : i32, i32, i32
  }
  func.func @transform_2(%arg0: i32, %arg1: i32) -> (i32, i32, i32) {
    %c0_i32 = arith.constant 0 : i32
    %c0_i32_0 = arith.constant 0 : i32
    return %arg0, %arg1, %c0_i32 : i32, i32, i32
  }
}

</mosaic_0001>

<llo_original>
// kernel: tpu_custom_call.1
$region0: #{tpu_custom_call.1}
  #allocation0 [shape = 'u32[]', space=smem, size = 0x4, offset = 0x4, fixed_abs, tag = 'smem constant byte address 0x4 - core index']
  #allocation1 [shape = 'u32[144,128]{1,0:T(1,128)}', space=vmem, size = 0x12000, scoped, tag = 'internal scratch']
  %s0 = inlined_call_operand.hbm [shape: f32[2,4,32], index: 0, kind: input, shape index: {}]
  %s1 = inlined_call_operand.hbm [shape: f32[2,4,256], index: 1, kind: input, shape index: {}]
  %s2 = inlined_call_operand.hbm [shape: f32[2,4,256], index: 2, kind: output, shape index: {}]
  %s3 = sld [smem:[#allocation0]]
  $region49: #{tpu_custom_call.1} parent=0
    _
  %s5 = ssub.s32 1, %s3
  %s6 = scalar_select 0, %s5, %s3
  $region1: #{tpu_custom_call.1} parent=0
    #allocation2 [shape = 'u8[4096]{0}', space=vmem, size = 0x1000, scoped, tag = 'input window, operand 0']
    #allocation3 [shape = 's32[2]{0}', space=sflag, size = 0x8, scoped, tag = 'scoped memory for tpu_custom_call.1']
    #allocation4 [shape = 's32[2]{0}', space=sflag, size = 0x8, scoped, tag = 'scoped memory for tpu_custom_call.1']
    #allocation5 [shape = 'u8[8192]{0}', space=vmem, size = 0x2000, scoped, tag = 'input window, operand 1']
    #allocation6 [shape = 's32[2]{0}', space=sflag, size = 0x8, scoped, tag = 'scoped memory for tpu_custom_call.1']
    #allocation7 [shape = 'u8[8192]{0}', space=vmem, size = 0x2000, scoped, tag = 'output window, operand 0']
    %7 = vsyncpa [#allocation3], 0
    %s8 = scalar_lea.sflag [#allocation3], 1
    %9 = vsyncpa %s8, 0
    %10 = vsyncpa [#allocation6], 0
    %s11 = scalar_lea.sflag [#allocation6], 1
    %12 = vsyncpa %s11, 0
    %13 = vsyncpa [#allocation4], 0
    %s14 = scalar_lea.sflag [#allocation4], 1
    %15 = vsyncpa %s14, 0
    loop: start=0, step=1, limit=4
    $region2: #{tpu_custom_call.1} parent=1 // loop_pre_header
      _
    $region3: #{tpu_custom_call.1} parent=1 // loop_header
      %s17 = sphi 0, %s21
      %p18 = scmp.ge.s32.totalorder %s17, 4
      %s24 = sphi 0, %s36
      %s25 = sphi 0, %s32
      %s26 = sphi 0, %s24
      %s27 = sphi 0, %s25
      %s28 = sphi 0, %s26
      %s29 = sphi 0, %s27
      %s41 = sphi 0, %s43
      %s44 = sphi 0, %s41
      %s45 = sphi 0, %s44
      %s61 = sphi 0, %s45
      %s69 = sphi 0, %s71
      %s72 = sphi 0, %s69
      %s73 = sphi 0, %s72
      %s89 = sphi 0, %s73
      %s97 = sphi 0, %s99
      %s100 = sphi 0, %s97
      %s101 = sphi 0, %s100
      %s117 = sphi 0, %s101
    $region4: #{tpu_custom_call.1} parent=1 // loop_header_branch
      %20 = sbr.rel (%p18) target = $region8
    $region5: #{tpu_custom_call.1} parent=1 // loop_body
      %s22 = ssub.s32 %s17, 1
      %s23 = ssub.s32 %s17, 2
      %s30 = sadd.s32 1, %s25
      %p31 = scmp.ge.s32.totalorder %s30, 1
      %s32 = scalar_select %p31, 0, %s30
      %s33 = sadd.s32 1, %s24
      %s34 = scalar_select %p31, %s33, %s24
      %p35 = scmp.ge.s32.totalorder %s34, 2
      %s36 = scalar_select %p35, 0, %s34
      %s37 = ssub.s32 %s24, %s36
      %s38 = ssub.s32 %s25, %s32
      %s39 = sor.u32 %s37, %s38
      %p40 = scmp.eq.s32.totalorder %s39, 0
      %s42 = sadd.s32 %s41, 1
      %s43 = scalar_select %p40, %s41, %s42
      %p46 = pneg %p40
      %p47 = scmp.eq.s32.totalorder %s17, 1
      %p48 = por %p46, %p47
      %p49 = scmp.ne.s32.totalorder %s41, %s44
      %p50 = scmp.eq.s32.totalorder %s17, 0
      %p51 = por %p49, %p50
      %p52 = scmp.ne.s32.totalorder %s41, %s44
      %p53 = scmp.eq.s32.totalorder %s22, 1
      %p54 = por %p52, %p53
      %p55 = scmp.ne.s32.totalorder %s44, %s45
      %p56 = scmp.eq.s32.totalorder %s22, 0
      %p57 = por %p55, %p56
      %p58 = scmp.ne.s32.totalorder %s44, %s45
      %p59 = scmp.eq.s32.totalorder %s23, 1
      %p60 = por %p58, %p59
      %p62 = scmp.ne.s32.totalorder %s45, %s61
      %p63 = scmp.eq.s32.totalorder %s23, 0
      %p64 = por %p62, %p63
      %s65 = ssub.s32 %s24, %s36
      %s66 = ssub.s32 %s25, %s32
      %s67 = sor.u32 %s65, %s66
      %p68 = scmp.eq.s32.totalorder %s67, 0
      %s70 = sadd.s32 %s69, 1
      %s71 = scalar_select %p68, %s69, %s70
      %p74 = pneg %p68
      %p75 = scmp.eq.s32.totalorder %s17, 1
      %p76 = por %p74, %p75
      %p77 = scmp.ne.s32.totalorder %s69, %s72
      %p78 = scmp.eq.s32.totalorder %s17, 0
      %p79 = por %p77, %p78
      %p80 = scmp.ne.s32.totalorder %s69, %s72
      %p81 = scmp.eq.s32.totalorder %s22, 1
      %p82 = por %p80, %p81
      %p83 = scmp.ne.s32.totalorder %s72, %s73
      %p84 = scmp.eq.s32.totalorder %s22, 0
      %p85 = por %p83, %p84
      %p86 = scmp.ne.s32.totalorder %s72, %s73
      %p87 = scmp.eq.s32.totalorder %s23, 1
      %p88 = por %p86, %p87
      %p90 = scmp.ne.s32.totalorder %s73, %s89
      %p91 = scmp.eq.s32.totalorder %s23, 0
      %p92 = por %p90, %p91
      %s93 = ssub.s32 %s24, %s36
      %s94 = ssub.s32 %s25, %s32
      %s95 = sor.u32 %s93, %s94
      %p96 = scmp.eq.s32.totalorder %s95, 0
      %s98 = sadd.s32 %s97, 1
      %s99 = scalar_select %p96, %s97, %s98
      %p102 = pneg %p96
      %p103 = scmp.eq.s32.totalorder %s17, 1
      %p104 = por %p102, %p103
      %p105 = scmp.ne.s32.totalorder %s97, %s100
      %p106 = scmp.eq.s32.totalorder %s17, 0
      %p107 = por %p105, %p106
      %p108 = scmp.ne.s32.totalorder %s97, %s100
      %p109 = scmp.eq.s32.totalorder %s22, 1
      %p110 = por %p108, %p109
      %p111 = scmp.ne.s32.totalorder %s100, %s101
      %p112 = scmp.eq.s32.totalorder %s22, 0
      %p113 = por %p111, %p112
      %p114 = scmp.ne.s32.totalorder %s100, %s101
      %p115 = scmp.eq.s32.totalorder %s23, 1
      %p116 = por %p114, %p115
      %p118 = scmp.ne.s32.totalorder %s101, %s117
      %p119 = scmp.eq.s32.totalorder %s23, 0
      %p120 = por %p118, %p119
      %p121 = scmp.le.s32.totalorder 1, %s17
      %p122 = scmp.lt.s32.totalorder %s17, 3
      %p123 = pnand %p121, %p122
      %p124 = pneg %p123
      // Predicated region
      $region9: #{tpu_custom_call.1} parent=5 // pred_check
        _
      $region10: #{tpu_custom_call.1} parent=5 // pred_check_branch
        %126 = sbr.rel (%p123) target = $region12
      $region11: #{tpu_custom_call.1} parent=5 // pred_region
        %s127 = ssub.s32 %s17, 1
      $region12: #{tpu_custom_call.1} parent=5 // pred_fallthru
        _
      %p128 = scmp.lt.s32.totalorder %s17, 2
      // Predicated region
      $region13: #{tpu_custom_call.1} parent=5 // pred_check
        %p129 = pneg %p128
      $region14: #{tpu_custom_call.1} parent=5 // pred_check_branch
        %131 = sbr.rel (%p129) target = $region16
      $region15: #{tpu_custom_call.1} parent=5 // pred_region
        // Predicated region
        $region17: #{tpu_custom_call.1} parent=15 // pred_check
          %p132 = pneg %p51
        $region18: #{tpu_custom_call.1} parent=15 // pred_check_branch
          %134 = sbr.rel (%p132) target = $region20
        $region19: #{tpu_custom_call.1} parent=15 // pred_region
          %s135 = sand.u32 %s41, 1
          %s136 = scalar_lea.sflag [#allocation3], %s135
          %s137 = sand.u32 %s41, 1
          %s138 = smul.addr %s137, 4
          %s139 = scalar_lea.vmem [#allocation2], %s138
          %s141 = ssub.s32 64, 64
          %142 = vsyncadd %s136, %s141
          %s143 = sadd.s32 %s25, %s24
          %s144 = smul.addr %s143, 64
          %s145 = scalar_lea.hbm %s0, %s144
          %s147 = sshll.u32 %s139, 4
          %s148 = int_to_ptr.vmem [resolvable:$true] %s147
          %150 = dma.hbm_to_vmem [thread:$0]  %s145, 64, %s148, %s136
        $region20: #{tpu_custom_call.1} parent=15 // pred_fallthru
          _
        // Predicated region
        $region21: #{tpu_custom_call.1} parent=15 // pred_check
          %p151 = pneg %p79
        $region22: #{tpu_custom_call.1} parent=15 // pred_check_branch
          %153 = sbr.rel (%p151) target = $region24
        $region23: #{tpu_custom_call.1} parent=15 // pred_region
          %s154 = sand.u32 %s69, 1
          %s155 = scalar_lea.sflag [#allocation6], %s154
          %s156 = sand.u32 %s69, 1
          %s157 = smul.addr %s156, 8
          %s158 = scalar_lea.vmem [#allocation5], %s157
          %s160 = ssub.s32 128, 128
          %161 = vsyncadd %s155, %s160
          %s162 = smul.addr %s25, 2
          %s163 = smul.addr %s24, 2
          %s164 = sadd.s32 %s162, %s163
          %s165 = smul.addr %s164, 64
          %s166 = scalar_lea.hbm %s1, %s165
          %s168 = sshll.u32 %s158, 4
          %s169 = int_to_ptr.vmem [resolvable:$true] %s168
          %171 = dma.hbm_to_vmem [thread:$0]  %s166, 128, %s169, %s155
        $region24: #{tpu_custom_call.1} parent=15 // pred_fallthru
          _
      $region16: #{tpu_custom_call.1} parent=5 // pred_fallthru
        _
      %p172 = scmp.le.s32.totalorder 1, %s17
      %p173 = scmp.lt.s32.totalorder %s17, 3
      %p174 = pnand %p172, %p173
      %p175 = pneg %p174
      // Predicated region
      $region25: #{tpu_custom_call.1} parent=5 // pred_check
        _
      $region26: #{tpu_custom_call.1} parent=5 // pred_check_branch
        %177 = sbr.rel (%p174) target = $region28
      $region27: #{tpu_custom_call.1} parent=5 // pred_region
        %s178 = ssub.s32 %s17, 1
        %s179 = sand.u32 %s44, 1
        %s180 = scalar_lea.sflag [#allocation3], %s179
        %s181 = sand.u32 %s44, 1
        %s182 = smul.addr %s181, 4
        %s183 = scalar_lea.vmem [#allocation2], %s182
        // Predicated region
        $region29: #{tpu_custom_call.1} parent=27 // pred_check
          %p184 = pneg %p57
        $region30: #{tpu_custom_call.1} parent=27 // pred_check_branch
          %186 = sbr.rel (%p184) target = $region32
        $region31: #{tpu_custom_call.1} parent=27 // pred_region
          %187 = dma.done %s180, 64
        $region32: #{tpu_custom_call.1} parent=27 // pred_fallthru
          _
        %s188 = sand.u32 %s72, 1
        %s189 = scalar_lea.sflag [#allocation6], %s188
        %s190 = sand.u32 %s72, 1
        %s191 = smul.addr %s190, 8
        %s192 = scalar_lea.vmem [#allocation5], %s191
        // Predicated region
        $region33: #{tpu_custom_call.1} parent=27 // pred_check
          %p193 = pneg %p85
        $region34: #{tpu_custom_call.1} parent=27 // pred_check_branch
          %195 = sbr.rel (%p193) target = $region36
        $region35: #{tpu_custom_call.1} parent=27 // pred_region
          %196 = dma.done %s189, 128
        $region36: #{tpu_custom_call.1} parent=27 // pred_fallthru
          _
        %s197 = sand.u32 %s44, 1
        %s198 = scalar_lea.sflag [#allocation3], %s197
        %s199 = sand.u32 %s44, 1
        %s200 = smul.addr %s199, 4
        %s201 = scalar_lea.vmem [#allocation2], %s200
        %p202 = pneg %p57
        %p203 = pneg %p54
        %s204 = sand.u32 %s72, 1
        %s205 = scalar_lea.sflag [#allocation6], %s204
        %s206 = sand.u32 %s72, 1
        %s207 = smul.addr %s206, 8
        %s208 = scalar_lea.vmem [#allocation5], %s207
        %p209 = pneg %p85
        %p210 = pneg %p82
        %p211 = pneg %p113
        %p212 = pneg %p110
        %s213 = sand.u32 %s100, 1
        %s214 = scalar_lea.sflag [#allocation4], %s213
        %s215 = sand.u32 %s100, 1
        %s216 = smul.addr %s215, 8
        %s217 = scalar_lea.vmem [#allocation7], %s216
        %v218 = vld [vmem:[%s183] sm:$0xf]
        %220 = vrot.lane.b32.xlu0 %v218, 32
        %v221 = vpop.permute.xlu0 %220
        %223 = vrot.lane.b32.xlu0 %v218, 64
        %v224 = vpop.permute.xlu0 %223
        %226 = vrot.lane.b32.xlu0 %v218, 96
        %v227 = vpop.permute.xlu0 %226
        %vm229 = vcmask 261120
        %v230 = vsel %vm229, %v218, %v221
        %vm231 = vcmask 523264
        %v232 = vsel %vm231, %v230, %v224
        %vm233 = vcmask 785408
        %v234 = vsel %vm233, %v232, %v227
        %v235 = vld [vmem:[%s192] sm:$0xff]
        %v237 = vcombine.low %v234, %v234
        %v239 = vadd.f32 %v235, %v237
        %240 = vst [vmem:[%s217] sm:$0xff] %v239
        %s241 = sand.u32 %s100, 1
        %s242 = scalar_lea.sflag [#allocation4], %s241
        %s243 = sand.u32 %s100, 1
        %s244 = smul.addr %s243, 8
        %s245 = scalar_lea.vmem [#allocation7], %s244
        // Predicated region
        $region37: #{tpu_custom_call.1} parent=27 // pred_check
          %p246 = pneg %p110
        $region38: #{tpu_custom_call.1} parent=27 // pred_check_branch
          %248 = sbr.rel (%p246) target = $region40
        $region39: #{tpu_custom_call.1} parent=27 // pred_region
          %s250 = ssub.s32 128, 128
          %251 = vsyncadd %s242, %s250
          %s252 = smul.addr %s27, 2
          %s253 = smul.addr %s26, 2
          %s254 = sadd.s32 %s252, %s253
          %s255 = smul.addr %s254, 64
          %s256 = scalar_lea.hbm %s2, %s255
          %s258 = sshll.u32 %s245, 4
          %s259 = int_to_ptr.vmem [resolvable:$true] %s258
          %261 = dma.vmem_to_hbm [thread:$0]  %s259, 128, %s256, %s242
        $region40: #{tpu_custom_call.1} parent=27 // pred_fallthru
          _
      $region28: #{tpu_custom_call.1} parent=5 // pred_fallthru
        _
      %p262 = scmp.le.s32.totalorder 2, %s17
      // Predicated region
      $region41: #{tpu_custom_call.1} parent=5 // pred_check
        %p263 = pneg %p262
      $region42: #{tpu_custom_call.1} parent=5 // pred_check_branch
        %265 = sbr.rel (%p263) target = $region44
      $region43: #{tpu_custom_call.1} parent=5 // pred_region
        %s266 = ssub.s32 %s17, 2
        // Predicated region
        $region45: #{tpu_custom_call.1} parent=43 // pred_check
          %p267 = pneg %p116
        $region46: #{tpu_custom_call.1} parent=43 // pred_check_branch
          %269 = sbr.rel (%p267) target = $region48
        $region47: #{tpu_custom_call.1} parent=43 // pred_region
          %s270 = sand.u32 %s101, 1
          %s271 = scalar_lea.sflag [#allocation4], %s270
          %s272 = sand.u32 %s101, 1
          %s273 = smul.addr %s272, 8
          %s274 = scalar_lea.vmem [#allocation7], %s273
          %275 = dma.done %s271, 128
        $region48: #{tpu_custom_call.1} parent=43 // pred_fallthru
          _
      $region44: #{tpu_custom_call.1} parent=5 // pred_fallthru
        _
    $region6: #{tpu_custom_call.1} parent=1 // loop_footer
      %s21 = sadd.s32 1, %s17
    $region7: #{tpu_custom_call.1} parent=1 // loop_footer_branch
      %16 = sbr.rel target = $region3
    $region8: #{tpu_custom_call.1} parent=1 // loop_exit
      _
    %276 = vsyncpa [#allocation3], 1
    %s277 = scalar_lea.sflag [#allocation3], 1
    %278 = vsyncpa %s277, 1
    %279 = vsyncpa [#allocation6], 1
    %s280 = scalar_lea.sflag [#allocation6], 1
    %281 = vsyncpa %s280, 1
    %282 = vsyncpa [#allocation4], 1
    %s283 = scalar_lea.sflag [#allocation4], 1
    %284 = vsyncpa %s283, 1

</llo_original>
